<compile_context>
chip_gen: v5e
topology: v5e:2x2
jax: 0.10.0
libtpu: 0.0.40
codegen_flags: <defaults>
</compile_context>

<pallas_src>
import functools

import jax
import jax.numpy as jnp
from jax import lax
from jax.experimental import pallas as pl
from jax.experimental.pallas import tpu as pltpu

CLAMP = 1.9


def _flow_kernel(x_ref, cl_ref, cd_ref,
                 wf_ref, bf_ref,
                 cw1_ref, cb1_ref, caw2_ref, cab2_ref,
                 cpw1x_ref, cpw2_ref, cpb2_ref,
                 y_ref, jac_ref, *, depth, n_ch, hidden, sub):
    """One (channels, row_block) tile of the fused flow.

    Layout: channels on sublanes, rows (pixels) on the 128-lane axis.  The
    row_block is processed in `sub`-lane sub-tiles (lax.fori_loop) so the
    hoisted condition-subnet intermediates never blow the 64-vreg file, while
    the outer BlockSpec block stays large to amortise grid-step/DMA overhead.
    """
    C = n_ch
    Ch = C // 2
    HID = hidden
    bf16 = jnp.bfloat16
    row_block = x_ref.shape[-1]
    n_sub = row_block // sub

    def mm(w, a):
        # bf16 x bf16 -> f32-accumulated MXU matmul (weights are already bf16)
        return jnp.dot(w, a.astype(bf16), preferred_element_type=jnp.float32)

    def process(r0):
        sl = pl.ds(r0, sub)
        xb = x_ref[:, sl]                                            # (C, sub) f32
        c = jnp.concatenate([cl_ref[:, sl], cd_ref[:, sl]], axis=0)  # (2C, sub)

        # ---- condition-only work, hoisted off the serial x chain -----------
        # One stacked dot for every depth's ConditionalAffine layer-1 and the
        # condition half of every coupling layer-1 ...
        hc = mm(cw1_ref[...], c) + cb1_ref[...]            # (2*depth*HID, sub) f32
        ca_h = jnp.maximum(hc[:depth * HID], 0.0)          # ReLU (CA subnet only)
        # ... and one block-diagonal dot for every depth's CA layer-2.
        st_ca = mm(caw2_ref[...], ca_h) + cab2_ref[...]    # (2*depth*C, sub) f32

        jac = jnp.zeros((1, sub), jnp.float32)

        # ---- serial chain: fused (ActNorm o 1x1 conv), then per-depth steps
        x = mm(wf_ref[0], xb) + bf_ref[0]
        for d in range(depth):
            x = mm(wf_ref[1 + d], x) + bf_ref[1 + d]
            # ConditionalAffineTransform (s-rows of weights pre-scaled by 1/CLAMP)
            st = st_ca[2 * C * d:2 * C * (d + 1)]
            s = CLAMP * jnp.tanh(st[:C])
            jac = jac + jnp.sum(s, axis=0, keepdims=True)
            x = x * jnp.exp(s) + st[C:]
            # AffineCouplingOneSided: subnet([x1, c]) rescales/shifts x2.
            # Split at C/2 = sublane boundary -> no cross-lane shuffle.
            x1 = x[:Ch]
            x2 = x[Ch:]
            pre = hc[(depth + d) * HID:(depth + d + 1) * HID]
            h2 = jnp.maximum(mm(cpw1x_ref[d], x1) + pre, 0.0)
            st2 = mm(cpw2_ref[d], h2) + cpb2_ref[d]
            s2 = CLAMP * jnp.tanh(st2[:Ch])
            jac = jac + jnp.sum(s2, axis=0, keepdims=True)
            x2 = x2 * jnp.exp(s2) + st2[Ch:]
            x = jnp.concatenate([x1, x2], axis=0)

        y_ref[:, sl] = x
        # lane-dense per-pixel data-dependent log-det (broadcast over 8 sublanes
        # only to keep the output block (8,128)-tileable; row 0 is used outside)
        jac_ref[:, sl] = jnp.broadcast_to(jac, (jac_ref.shape[0], sub))

    if n_sub == 1:
        process(0)                                  # fully static path (demo size)
    else:
        def body(i, carry):
            process(pl.multiple_of(i * sub, sub))   # 128-aligned dynamic offsets
            return carry
        lax.fori_loop(0, n_sub, body, 0)


# ------------------------------ plain-JAX glue ------------------------------

def space_to_depth(x):
    """IRevNetDownsampling / squeeze: (N,C,H,W) -> (N,4C,H/2,W/2)."""
    N, C, H, W = x.shape
    x = x.reshape(N, C, H // 2, 2, W // 2, 2)
    x = x.transpose(0, 3, 5, 1, 2, 4)
    return x.reshape(N, 4 * C, H // 2, W // 2)


def nchw_to_rows(x):
    N, C, H, W = x.shape
    return x.transpose(0, 2, 3, 1).reshape(N, H * W, C)


def rows_to_nchw(x, H, W):
    N, HW, C = x.shape
    return x.reshape(N, H, W, C).transpose(0, 3, 1, 2)


def make_params(key, channels, dim, depth, hidden):
    """Synthetic parameters in PyTorch-like (row-layout) convention."""
    Cp = (2 ** dim) * channels          # transformed channels
    Cc = 2 * Cp                         # concat of two squeezed conditions
    n_steps = 1 + depth
    ks = jax.random.split(key, 12)

    an_s = 0.05 * jax.random.normal(ks[0], (n_steps, Cp), jnp.float32)
    an_b = 0.05 * jax.random.normal(ks[1], (n_steps, Cp), jnp.float32)

    # invertible 1x1 conv mixing matrices: orthogonal via QR (deterministic)
    raw = jax.random.normal(ks[2], (n_steps, Cp, Cp), jnp.float32)
    cw = jnp.stack([jnp.linalg.qr(raw[i])[0] for i in range(n_steps)], axis=0)

    ca_w1 = 0.1 * jax.random.normal(ks[3], (depth, Cc, hidden), jnp.float32)
    ca_b1 = 0.05 * jax.random.normal(ks[7], (depth, hidden), jnp.float32)
    ca_w2 = 0.1 * jax.random.normal(ks[4], (depth, hidden, 2 * Cp), jnp.float32)
    ca_b2 = 0.05 * jax.random.normal(ks[8], (depth, 2 * Cp), jnp.float32)

    cp_in = Cp // 2 + Cc
    cp_w1 = 0.1 * jax.random.normal(ks[5], (depth, cp_in, hidden), jnp.float32)
    cp_b1 = 0.05 * jax.random.normal(ks[9], (depth, hidden), jnp.float32)
    cp_w2 = 0.1 * jax.random.normal(ks[6], (depth, hidden, Cp), jnp.float32)
    cp_b2 = 0.05 * jax.random.normal(ks[10], (depth, Cp), jnp.float32)

    return dict(an_s=an_s, an_b=an_b, cw=cw,
                ca_w1=ca_w1, ca_b1=ca_b1, ca_w2=ca_w2, ca_b2=ca_b2,
                cp_w1=cp_w1, cp_b1=cp_b1, cp_w2=cp_w2, cp_b2=cp_b2)


def prepare_params(params, *, depth):
    """One-time weight preparation for the kernel layout:
    fold ActNorm into the 1x1 convs, transpose for channels-on-sublane,
    stack/block-diagonalise the condition-only subnet weights across depth,
    fold 1/CLAMP into the s-half output rows, pre-cast matmul weights to bf16,
    and cache the parameter-only log-det."""
    an_s, an_b, cw = params["an_s"], params["an_b"], params["cw"]
    bf16 = jnp.bfloat16
    exp_s = jnp.exp(an_s)

    # row layout:  y = (x*e^s) @ M + b @ M
    # CR layout :  y_cr = (M.T diag(e^s)) @ x_cr + (M.T @ b)[:,None]
    wf = jnp.transpose(cw * exp_s[:, :, None], (0, 2, 1))      # (1+depth, C, C)
    bf = jnp.einsum("ni,nij->nj", an_b, cw)[..., None]          # (1+depth, C, 1)

    C = cw.shape[-1]
    Ch = C // 2
    hid = params["ca_w1"].shape[-1]
    Cc = params["ca_w1"].shape[1]

    # stacked condition-only first layer:
    #   rows [0, depth*HID)          : ConditionalAffine layer-1 per depth
    #   rows [depth*HID, 2*depth*HID): coupling layer-1, condition half, per depth
    ca_w1t = jnp.transpose(params["ca_w1"], (0, 2, 1))              # (depth, HID, Cc)
    cp_w1ct = jnp.transpose(params["cp_w1"][:, Ch:, :], (0, 2, 1))  # (depth, HID, Cc)
    cond_w1 = jnp.concatenate([ca_w1t.reshape(depth * hid, Cc),
                               cp_w1ct.reshape(depth * hid, Cc)], axis=0)
    cond_b1 = jnp.concatenate([params["ca_b1"].reshape(depth * hid),
                               params["cp_b1"].reshape(depth * hid)])[:, None]

    # ConditionalAffine second layer: block-diag across depth, s-rows / 1/CLAMP
    ca_scale = jnp.concatenate([jnp.full((C,), 1.0 / CLAMP, jnp.float32),
                                jnp.ones((C,), jnp.float32)])
    ca_w2t = jnp.transpose(params["ca_w2"], (0, 2, 1)) * ca_scale[None, :, None]
    ca_b2 = params["ca_b2"] * ca_scale[None, :]
    ca_w2blk = jnp.zeros((depth * 2 * C, depth * hid), jnp.float32)
    for d in range(depth):
        ca_w2blk = ca_w2blk.at[d * 2 * C:(d + 1) * 2 * C,
                               d * hid:(d + 1) * hid].set(ca_w2t[d])
    ca_b2 = ca_b2.reshape(depth * 2 * C)[:, None]

    # coupling subnet (the x1-dependent part stays per-depth on the serial chain)
    cp_scale = jnp.concatenate([jnp.full((Ch,), 1.0 / CLAMP, jnp.float32),
                                jnp.ones((Ch,), jnp.float32)])
    cp_w1x = jnp.transpose(params["cp_w1"][:, :Ch, :], (0, 2, 1))   # (depth, HID, C/2)
    cp_w2 = jnp.transpose(params["cp_w2"], (0, 2, 1)) * cp_scale[None, :, None]
    cp_b2 = (params["cp_b2"] * cp_scale[None, :])[..., None]        # (depth, C, 1)

    # parameter-only log-det per output pixel (ActNorm scales + 1x1 slogdet),
    # cached here instead of being recomputed every forward call.
    logdet_per_pixel = jnp.sum(an_s) + jnp.sum(jnp.linalg.slogdet(cw)[1])

    return dict(wf=wf.astype(bf16), bf=bf,
                cond_w1=cond_w1.astype(bf16), cond_b1=cond_b1,
                ca_w2blk=ca_w2blk.astype(bf16), ca_b2=ca_b2,
                cp_w1x=cp_w1x.astype(bf16), cp_w2=cp_w2.astype(bf16),
                cp_b2=cp_b2,
                logdet_per_pixel=logdet_per_pixel)


def _choose_row_block(r_pad, n_groups, max_row_block):
    """Largest 128-multiple divisor of r_pad <= max_row_block, preferring a
    choice that leaves >= 2 total grid blocks (v7x has two TensorCores)."""
    cands = [c for c in range(128, min(r_pad, max_row_block) + 1, 128)
             if r_pad % c == 0]
    if not cands:
        return 128
    multi = [c for c in cands if n_groups * (r_pad // c) >= 2]
    return max(multi) if multi else max(cands)


def g_S_forward(h, L, D, logdet, prep, *, depth,
                max_row_block=2048, sub_block=128):
    """Encode pass of g_S. h, L, D are NCHW float32; logdet is (N,)."""
    N, C_in, H, W = h.shape
    x = space_to_depth(h)                       # jac = 0 for the squeezes
    cL = space_to_depth(L)
    cD = space_to_depth(D)
    Hp, Wp = H // 2, W // 2
    Cp = 4 * C_in
    HWp = Hp * Wp
    hid = prep["cond_w1"].shape[0] // (2 * depth)

    # Channels on sublanes, pixels on the 128-lane axis.
    # Preferred path (no HBM transpose): when H'W' is lane-tileable, the squeezed
    # (N, C', H'W') tensors are fed as (N*C', H'W') -- a free reshape -- and the
    # grid's first axis walks the batch.  Otherwise (small demo sizes) fall back
    # to folding the batch into the lane axis (one transpose each way).
    use_batch_groups = (HWp % 128 == 0) and (Cp % 8 == 0)
    if use_batch_groups:
        G, R = N, HWp
        x2d = x.reshape(N * Cp, HWp)
        cl2d = cL.reshape(N * Cp, HWp)
        cd2d = cD.reshape(N * Cp, HWp)
        r_pad = R
    else:
        G, R = 1, N * HWp

        def to2d(a):
            return a.reshape(N, Cp, HWp).transpose(1, 0, 2).reshape(Cp, R)

        x2d, cl2d, cd2d = to2d(x), to2d(cL), to2d(cD)
        r_pad = -(-R // 128) * 128
        if r_pad != R:
            pad = ((0, 0), (0, r_pad - R))
            x2d = jnp.pad(x2d, pad)
            cl2d = jnp.pad(cl2d, pad)
            cd2d = jnp.pad(cd2d, pad)

    row_block = _choose_row_block(r_pad, G, max_row_block)
    sub = min(sub_block, row_block)             # inner sub-tile (vreg budget)
    grid = (G, r_pad // row_block)

    weights = (prep["wf"], prep["bf"],
               prep["cond_w1"], prep["cond_b1"],
               prep["ca_w2blk"], prep["ca_b2"],
               prep["cp_w1x"], prep["cp_w2"], prep["cp_b2"])

    def _wspec(w):
        nd = w.ndim
        return pl.BlockSpec(w.shape, lambda g, r: (0,) * nd)

    data_spec = pl.BlockSpec((Cp, row_block), lambda g, r: (g, r))

    kernel = functools.partial(_flow_kernel, depth=depth, n_ch=Cp,
                               hidden=hid, sub=sub)

    y2d, jac2d = pl.pallas_call(
        kernel,
        out_shape=[jax.ShapeDtypeStruct((G * Cp, r_pad), jnp.float32),
                   jax.ShapeDtypeStruct((G * 8, r_pad), jnp.float32)],
        grid_spec=pltpu.PrefetchScalarGridSpec(
            num_scalar_prefetch=0,
            grid=grid,
            in_specs=[data_spec, data_spec, data_spec]
                     + [_wspec(w) for w in weights],
            out_specs=[data_spec,
                       pl.BlockSpec((8, row_block), lambda g, r: (g, r))],
        ),
        compiler_params=pltpu.CompilerParams(
            dimension_semantics=("parallel", "parallel")),
    )(x2d, cl2d, cd2d, *weights)

    if use_batch_groups:
        y = y2d.reshape(N, Cp, Hp, Wp)
        jac_data = jac2d.reshape(N, 8, r_pad)[:, 0, :].sum(axis=1)
    else:
        y = (y2d[:, :R].reshape(Cp, N, HWp).transpose(1, 0, 2)
             .reshape(N, Cp, Hp, Wp))
        jac_data = jac2d[0, :R].reshape(N, HWp).sum(axis=1)

    logdet_out = logdet + HWp * prep["logdet_per_pixel"] + jac_data
    return y, logdet_out


def g_S_reference(h, L, D, logdet, params, *, depth):
    """Pure-JAX row-layout, unfused f32 reference (same math) for correctness."""
    x = space_to_depth(h)
    cL = space_to_depth(L)
    cD = space_to_depth(D)
    N, Cp, Hp, Wp = x.shape
    HWp = Hp * Wp
    xr = nchw_to_rows(x)                                           # (N, HW', C')
    cr = jnp.concatenate([nchw_to_rows(cL), nchw_to_rows(cD)], axis=-1)

    an_s, an_b, cw = params["an_s"], params["an_b"], params["cw"]
    ld = logdet
    C = Cp

    def actnorm_conv(xr, ld, i):
        xr = xr * jnp.exp(an_s[i]) + an_b[i]
        ld = ld + HWp * jnp.sum(an_s[i])
        xr = jnp.einsum("nrc,cd->nrd", xr, cw[i])
        ld = ld + HWp * jnp.linalg.slogdet(cw[i])[1]
        return xr, ld

    xr, ld = actnorm_conv(xr, ld, 0)
    for d in range(depth):
        xr, ld = actnorm_conv(xr, ld, 1 + d)
        h1 = jax.nn.relu(jnp.einsum("nrc,ch->nrh", cr, params["ca_w1"][d])
                         + params["ca_b1"][d])
        st = jnp.einsum("nrh,hc->nrc", h1, params["ca_w2"][d]) + params["ca_b2"][d]
        s = CLAMP * jnp.tanh(st[..., :C] / CLAMP)
        xr = xr * jnp.exp(s) + st[..., C:]
        ld = ld + jnp.sum(s, axis=(1, 2))
        x1, x2 = xr[..., :C // 2], xr[..., C // 2:]
        inp = jnp.concatenate([x1, cr], axis=-1)
        h2 = jax.nn.relu(jnp.einsum("nrc,ch->nrh", inp, params["cp_w1"][d])
                         + params["cp_b1"][d])
        st2 = jnp.einsum("nrh,hc->nrc", h2, params["cp_w2"][d]) + params["cp_b2"][d]
        s2 = CLAMP * jnp.tanh(st2[..., :C // 2] / CLAMP)
        x2 = x2 * jnp.exp(s2) + st2[..., C // 2:]
        xr = jnp.concatenate([x1, x2], axis=-1)
        ld = ld + jnp.sum(s2, axis=(1, 2))

    return rows_to_nchw(xr, Hp, Wp), ld


if __name__ == "__main__":
    # module hyperparameters (small, consistent with the PyTorch __init__)
    channels, dim, resolution, depth, hidden = 4, 2, (16, 16), 2, 32
    N = 2

    key = jax.random.PRNGKey(0)
    k_h, k_L, k_D, k_p = jax.random.split(key, 4)
    h = jax.random.normal(k_h, (N, channels) + resolution, jnp.float32)
    L = jax.random.normal(k_L, (N, channels) + resolution, jnp.float32)
    D = jax.random.normal(k_D, (N, channels) + resolution, jnp.float32)
    logdet = jnp.zeros((N,), jnp.float32)

    params = make_params(k_p, channels, dim, depth, hidden)
    prep = prepare_params(params, depth=depth)          # one-time prep (cached)

    y, logdet_out = g_S_forward(h, L, D, logdet, prep, depth=depth)
    jax.block_until_ready((y, logdet_out))

    assert y.shape == (N, (2 ** dim) * channels,
                       resolution[0] // 2, resolution[1] // 2)
    assert logdet_out.shape == (N,)

    # correctness check against the pure-JAX f32 reference of the same flow.
    # Tolerances reflect bf16 MXU operands (f32 accumulation) in the kernel.
    y_ref, ld_ref = g_S_reference(h, L, D, logdet, params, depth=depth)
    assert jnp.allclose(y, y_ref, atol=5e-2, rtol=5e-2), \
        float(jnp.max(jnp.abs(y - y_ref)))
    assert jnp.allclose(logdet_out, ld_ref, atol=1.0, rtol=2e-2), \
        (logdet_out, ld_ref)

    print("KERNEL_OK")
</pallas_src>

<mosaic_0001>
module attributes {stable_mosaic.version = 11 : i64} {
  func.func @_flow_kernel(%arg0: i32, %arg1: i32, %arg2: memref<16x128xf32, #tpu.memory_space<vmem>>, %arg3: memref<16x128xf32, #tpu.memory_space<vmem>>, %arg4: memref<16x128xf32, #tpu.memory_space<vmem>>, %arg5: memref<3x16x16xbf16, #tpu.memory_space<vmem>>, %arg6: memref<3x16x1xf32, #tpu.memory_space<vmem>>, %arg7: memref<128x32xbf16, #tpu.memory_space<vmem>>, %arg8: memref<128x1xf32, #tpu.memory_space<vmem>>, %arg9: memref<64x64xbf16, #tpu.memory_space<vmem>>, %arg10: memref<64x1xf32, #tpu.memory_space<vmem>>, %arg11: memref<2x32x8xbf16, #tpu.memory_space<vmem>>, %arg12: memref<2x16x32xbf16, #tpu.memory_space<vmem>>, %arg13: memref<2x16x1xf32, #tpu.memory_space<vmem>>, %arg14: memref<16x128xf32, #tpu.memory_space<vmem>>, %arg15: memref<8x128xf32, #tpu.memory_space<vmem>>) attributes {dimension_semantics = [#tpu.dimension_semantics<parallel>, #tpu.dimension_semantics<parallel>], iteration_bounds = array<i64: 1, 1>, scalar_prefetch = 0 : i64, scratch_operands = 0 : i64, tpu.core_type = #tpu.core_type<tc>, window_params = [{transform_indices = @transform_0, window_bounds = array<i64: 16, 128>}, {transform_indices = @transform_1, window_bounds = array<i64: 16, 128>}, {transform_indices = @transform_2, window_bounds = array<i64: 16, 128>}, {pipeline_mode = #tpu.pipeline_mode<synchronous>, transform_indices = @transform_3, window_bounds = array<i64: 3, 16, 16>}, {pipeline_mode = #tpu.pipeline_mode<synchronous>, transform_indices = @transform_4, window_bounds = array<i64: 3, 16, 1>}, {pipeline_mode = #tpu.pipeline_mode<synchronous>, transform_indices = @transform_5, window_bounds = array<i64: 128, 32>}, {pipeline_mode = #tpu.pipeline_mode<synchronous>, transform_indices = @transform_6, window_bounds = array<i64: 128, 1>}, {pipeline_mode = #tpu.pipeline_mode<synchronous>, transform_indices = @transform_7, window_bounds = array<i64: 64, 64>}, {pipeline_mode = #tpu.pipeline_mode<synchronous>, transform_indices = @transform_8, window_bounds = array<i64: 64, 1>}, {pipeline_mode = #tpu.pipeline_mode<synchronous>, transform_indices = @transform_9, window_bounds = array<i64: 2, 32, 8>}, {pipeline_mode = #tpu.pipeline_mode<synchronous>, transform_indices = @transform_10, window_bounds = array<i64: 2, 16, 32>}, {pipeline_mode = #tpu.pipeline_mode<synchronous>, transform_indices = @transform_11, window_bounds = array<i64: 2, 16, 1>}, {transform_indices = @transform_12, window_bounds = array<i64: 16, 128>}, {transform_indices = @transform_13, window_bounds = array<i64: 8, 128>}]} {
    %c0 = arith.constant 0 : index
    %c0_0 = arith.constant 0 : index
    %0 = vector.load %arg2[%c0, %c0_0] : memref<16x128xf32, #tpu.memory_space<vmem>>, vector<16x128xf32>
    %c0_1 = arith.constant 0 : index
    %c0_2 = arith.constant 0 : index
    %1 = vector.load %arg3[%c0_1, %c0_2] : memref<16x128xf32, #tpu.memory_space<vmem>>, vector<16x128xf32>
    %c0_3 = arith.constant 0 : index
    %c0_4 = arith.constant 0 : index
    %2 = vector.load %arg4[%c0_3, %c0_4] : memref<16x128xf32, #tpu.memory_space<vmem>>, vector<16x128xf32>
    %3 = tpu.concatenate %1, %2 in 0 : vector<16x128xf32>, vector<16x128xf32> -> vector<32x128xf32>
    %c0_5 = arith.constant 0 : index
    %c0_6 = arith.constant 0 : index
    %4 = vector.load %arg7[%c0_5, %c0_6] : memref<128x32xbf16, #tpu.memory_space<vmem>>, vector<128x32xbf16>
    %5 = arith.truncf %3 : vector<32x128xf32> to vector<32x128xbf16>
    %cst = arith.constant dense<0.000000e+00> : vector<128x128xf32>
    %6 = tpu.matmul %4, %5, %cst {dimension_numbers = #tpu.dot_dimension_numbers<[1], [0], [0], [1], [0, 0, 1, 1], [], []>} : vector<128x32xbf16>, vector<32x128xbf16>, vector<128x128xf32> -> vector<128x128xf32>
    %c0_7 = arith.constant 0 : index
    %c0_8 = arith.constant 0 : index
    %7 = vector.load %arg8[%c0_7, %c0_8] : memref<128x1xf32, #tpu.memory_space<vmem>>, vector<128x1xf32>
    %8 = vector.broadcast %7 : vector<128x1xf32> to vector<128x128xf32>
    %9 = arith.addf %6, %8 : vector<128x128xf32>
    %10 = vector.extract_strided_slice %9 {offsets = [0, 0], sizes = [64, 128], strides = [1, 1]} : vector<128x128xf32> to vector<64x128xf32>
    %cst_9 = arith.constant 0.000000e+00 : f32
    %11 = vector.broadcast %cst_9 : f32 to vector<64x128xf32>
    %12 = arith.maximumf %10, %11 : vector<64x128xf32>
    %c0_10 = arith.constant 0 : index
    %c0_11 = arith.constant 0 : index
    %13 = vector.load %arg9[%c0_10, %c0_11] : memref<64x64xbf16, #tpu.memory_space<vmem>>, vector<64x64xbf16>
    %14 = arith.truncf %12 : vector<64x128xf32> to vector<64x128xbf16>
    %cst_12 = arith.constant dense<0.000000e+00> : vector<64x128xf32>
    %15 = tpu.matmul %13, %14, %cst_12 {dimension_numbers = #tpu.dot_dimension_numbers<[1], [0], [0], [1], [0, 0, 1, 1], [], []>} : vector<64x64xbf16>, vector<64x128xbf16>, vector<64x128xf32> -> vector<64x128xf32>
    %c0_13 = arith.constant 0 : index
    %c0_14 = arith.constant 0 : index
    %16 = vector.load %arg10[%c0_13, %c0_14] : memref<64x1xf32, #tpu.memory_space<vmem>>, vector<64x1xf32>
    %17 = vector.broadcast %16 : vector<64x1xf32> to vector<64x128xf32>
    %18 = arith.addf %15, %17 : vector<64x128xf32>
    %cst_15 = arith.constant 0.000000e+00 : f32
    %19 = vector.broadcast %cst_15 : f32 to vector<1x128xf32>
    %c0_16 = arith.constant 0 : index
    %c0_17 = arith.constant 0 : index
    %c0_18 = arith.constant 0 : index
    %20 = vector.load %arg5[%c0_16, %c0_17, %c0_18] : memref<3x16x16xbf16, #tpu.memory_space<vmem>>, vector<1x16x16xbf16>
    %21 = vector.shape_cast %20 : vector<1x16x16xbf16> to vector<16x16xbf16>
    %22 = arith.truncf %0 : vector<16x128xf32> to vector<16x128xbf16>
    %cst_19 = arith.constant dense<0.000000e+00> : vector<16x128xf32>
    %23 = tpu.matmul %21, %22, %cst_19 {dimension_numbers = #tpu.dot_dimension_numbers<[1], [0], [0], [1], [0, 0, 1, 1], [], []>} : vector<16x16xbf16>, vector<16x128xbf16>, vector<16x128xf32> -> vector<16x128xf32>
    %c0_20 = arith.constant 0 : index
    %c0_21 = arith.constant 0 : index
    %c0_22 = arith.constant 0 : index
    %24 = vector.load %arg6[%c0_20, %c0_21, %c0_22] : memref<3x16x1xf32, #tpu.memory_space<vmem>>, vector<1x16x1xf32>
    %25 = vector.shape_cast %24 : vector<1x16x1xf32> to vector<16x1xf32>
    %26 = vector.broadcast %25 : vector<16x1xf32> to vector<16x128xf32>
    %27 = arith.addf %23, %26 : vector<16x128xf32>
    %c1 = arith.constant 1 : index
    %c0_23 = arith.constant 0 : index
    %c0_24 = arith.constant 0 : index
    %28 = vector.load %arg5[%c1, %c0_23, %c0_24] : memref<3x16x16xbf16, #tpu.memory_space<vmem>>, vector<1x16x16xbf16>
    %29 = vector.shape_cast %28 : vector<1x16x16xbf16> to vector<16x16xbf16>
    %30 = arith.truncf %27 : vector<16x128xf32> to vector<16x128xbf16>
    %cst_25 = arith.constant dense<0.000000e+00> : vector<16x128xf32>
    %31 = tpu.matmul %29, %30, %cst_25 {dimension_numbers = #tpu.dot_dimension_numbers<[1], [0], [0], [1], [0, 0, 1, 1], [], []>} : vector<16x16xbf16>, vector<16x128xbf16>, vector<16x128xf32> -> vector<16x128xf32>
    %c1_26 = arith.constant 1 : index
    %c0_27 = arith.constant 0 : index
    %c0_28 = arith.constant 0 : index
    %32 = vector.load %arg6[%c1_26, %c0_27, %c0_28] : memref<3x16x1xf32, #tpu.memory_space<vmem>>, vector<1x16x1xf32>
    %33 = vector.shape_cast %32 : vector<1x16x1xf32> to vector<16x1xf32>
    %34 = vector.broadcast %33 : vector<16x1xf32> to vector<16x128xf32>
    %35 = arith.addf %31, %34 : vector<16x128xf32>
    %36 = vector.extract_strided_slice %18 {offsets = [0, 0], sizes = [32, 128], strides = [1, 1]} : vector<64x128xf32> to vector<32x128xf32>
    %37 = vector.extract_strided_slice %36 {offsets = [0, 0], sizes = [16, 128], strides = [1, 1]} : vector<32x128xf32> to vector<16x128xf32>
    %38 = math.tanh %37 : vector<16x128xf32>
    %cst_29 = arith.constant 1.900000e+00 : f32
    %39 = vector.broadcast %cst_29 : f32 to vector<16x128xf32>
    %40 = arith.mulf %39, %38 : vector<16x128xf32>
    %cst_30 = arith.constant dense<0.000000e+00> : vector<128xf32>
    %41 = vector.multi_reduction <add>, %40, %cst_30 [0] : vector<16x128xf32> to vector<128xf32>
    %42 = vector.shape_cast %41 : vector<128xf32> to vector<1x128xf32>
    %43 = arith.addf %19, %42 : vector<1x128xf32>
    %44 = math.exp %40 : vector<16x128xf32>
    %45 = arith.mulf %35, %44 : vector<16x128xf32>
    %46 = vector.extract_strided_slice %36 {offsets = [16, 0], sizes = [16, 128], strides = [1, 1]} : vector<32x128xf32> to vector<16x128xf32>
    %47 = arith.addf %45, %46 : vector<16x128xf32>
    %48 = vector.extract_strided_slice %47 {offsets = [0, 0], sizes = [8, 128], strides = [1, 1]} : vector<16x128xf32> to vector<8x128xf32>
    %49 = vector.extract_strided_slice %47 {offsets = [8, 0], sizes = [8, 128], strides = [1, 1]} : vector<16x128xf32> to vector<8x128xf32>
    %50 = vector.extract_strided_slice %9 {offsets = [64, 0], sizes = [32, 128], strides = [1, 1]} : vector<128x128xf32> to vector<32x128xf32>
    %c0_31 = arith.constant 0 : index
    %c0_32 = arith.constant 0 : index
    %c0_33 = arith.constant 0 : index
    %51 = vector.load %arg11[%c0_31, %c0_32, %c0_33] : memref<2x32x8xbf16, #tpu.memory_space<vmem>>, vector<1x32x8xbf16>
    %52 = vector.shape_cast %51 : vector<1x32x8xbf16> to vector<32x8xbf16>
    %53 = arith.truncf %48 : vector<8x128xf32> to vector<8x128xbf16>
    %cst_34 = arith.constant dense<0.000000e+00> : vector<32x128xf32>
    %54 = tpu.matmul %52, %53, %cst_34 {dimension_numbers = #tpu.dot_dimension_numbers<[1], [0], [0], [1], [0, 0, 1, 1], [], []>} : vector<32x8xbf16>, vector<8x128xbf16>, vector<32x128xf32> -> vector<32x128xf32>
    %55 = arith.addf %54, %50 : vector<32x128xf32>
    %cst_35 = arith.constant 0.000000e+00 : f32
    %56 = vector.broadcast %cst_35 : f32 to vector<32x128xf32>
    %57 = arith.maximumf %55, %56 : vector<32x128xf32>
    %c0_36 = arith.constant 0 : index
    %c0_37 = arith.constant 0 : index
    %c0_38 = arith.constant 0 : index
    %58 = vector.load %arg12[%c0_36, %c0_37, %c0_38] : memref<2x16x32xbf16, #tpu.memory_space<vmem>>, vector<1x16x32xbf16>
    %59 = vector.shape_cast %58 : vector<1x16x32xbf16> to vector<16x32xbf16>
    %60 = arith.truncf %57 : vector<32x128xf32> to vector<32x128xbf16>
    %cst_39 = arith.constant dense<0.000000e+00> : vector<16x128xf32>
    %61 = tpu.matmul %59, %60, %cst_39 {dimension_numbers = #tpu.dot_dimension_numbers<[1], [0], [0], [1], [0, 0, 1, 1], [], []>} : vector<16x32xbf16>, vector<32x128xbf16>, vector<16x128xf32> -> vector<16x128xf32>
    %c0_40 = arith.constant 0 : index
    %c0_41 = arith.constant 0 : index
    %c0_42 = arith.constant 0 : index
    %62 = vector.load %arg13[%c0_40, %c0_41, %c0_42] : memref<2x16x1xf32, #tpu.memory_space<vmem>>, vector<1x16x1xf32>
    %63 = vector.shape_cast %62 : vector<1x16x1xf32> to vector<16x1xf32>
    %64 = vector.broadcast %63 : vector<16x1xf32> to vector<16x128xf32>
    %65 = arith.addf %61, %64 : vector<16x128xf32>
    %66 = vector.extract_strided_slice %65 {offsets = [0, 0], sizes = [8, 128], strides = [1, 1]} : vector<16x128xf32> to vector<8x128xf32>
    %67 = math.tanh %66 : vector<8x128xf32>
    %cst_43 = arith.constant 1.900000e+00 : f32
    %68 = vector.broadcast %cst_43 : f32 to vector<8x128xf32>
    %69 = arith.mulf %68, %67 : vector<8x128xf32>
    %cst_44 = arith.constant dense<0.000000e+00> : vector<128xf32>
    %70 = vector.multi_reduction <add>, %69, %cst_44 [0] : vector<8x128xf32> to vector<128xf32>
    %71 = vector.shape_cast %70 : vector<128xf32> to vector<1x128xf32>
    %72 = arith.addf %43, %71 : vector<1x128xf32>
    %73 = math.exp %69 : vector<8x128xf32>
    %74 = arith.mulf %49, %73 : vector<8x128xf32>
    %75 = vector.extract_strided_slice %65 {offsets = [8, 0], sizes = [8, 128], strides = [1, 1]} : vector<16x128xf32> to vector<8x128xf32>
    %76 = arith.addf %74, %75 : vector<8x128xf32>
    %77 = tpu.concatenate %48, %76 in 0 : vector<8x128xf32>, vector<8x128xf32> -> vector<16x128xf32>
    %c2 = arith.constant 2 : index
    %c0_45 = arith.constant 0 : index
    %c0_46 = arith.constant 0 : index
    %78 = vector.load %arg5[%c2, %c0_45, %c0_46] : memref<3x16x16xbf16, #tpu.memory_space<vmem>>, vector<1x16x16xbf16>
    %79 = vector.shape_cast %78 : vector<1x16x16xbf16> to vector<16x16xbf16>
    %80 = arith.truncf %77 : vector<16x128xf32> to vector<16x128xbf16>
    %cst_47 = arith.constant dense<0.000000e+00> : vector<16x128xf32>
    %81 = tpu.matmul %79, %80, %cst_47 {dimension_numbers = #tpu.dot_dimension_numbers<[1], [0], [0], [1], [0, 0, 1, 1], [], []>} : vector<16x16xbf16>, vector<16x128xbf16>, vector<16x128xf32> -> vector<16x128xf32>
    %c2_48 = arith.constant 2 : index
    %c0_49 = arith.constant 0 : index
    %c0_50 = arith.constant 0 : index
    %82 = vector.load %arg6[%c2_48, %c0_49, %c0_50] : memref<3x16x1xf32, #tpu.memory_space<vmem>>, vector<1x16x1xf32>
    %83 = vector.shape_cast %82 : vector<1x16x1xf32> to vector<16x1xf32>
    %84 = vector.broadcast %83 : vector<16x1xf32> to vector<16x128xf32>
    %85 = arith.addf %81, %84 : vector<16x128xf32>
    %86 = vector.extract_strided_slice %18 {offsets = [32, 0], sizes = [32, 128], strides = [1, 1]} : vector<64x128xf32> to vector<32x128xf32>
    %87 = vector.extract_strided_slice %86 {offsets = [0, 0], sizes = [16, 128], strides = [1, 1]} : vector<32x128xf32> to vector<16x128xf32>
    %88 = math.tanh %87 : vector<16x128xf32>
    %cst_51 = arith.constant 1.900000e+00 : f32
    %89 = vector.broadcast %cst_51 : f32 to vector<16x128xf32>
    %90 = arith.mulf %89, %88 : vector<16x128xf32>
    %cst_52 = arith.constant dense<0.000000e+00> : vector<128xf32>
    %91 = vector.multi_reduction <add>, %90, %cst_52 [0] : vector<16x128xf32> to vector<128xf32>
    %92 = vector.shape_cast %91 : vector<128xf32> to vector<1x128xf32>
    %93 = arith.addf %72, %92 : vector<1x128xf32>
    %94 = math.exp %90 : vector<16x128xf32>
    %95 = arith.mulf %85, %94 : vector<16x128xf32>
    %96 = vector.extract_strided_slice %86 {offsets = [16, 0], sizes = [16, 128], strides = [1, 1]} : vector<32x128xf32> to vector<16x128xf32>
    %97 = arith.addf %95, %96 : vector<16x128xf32>
    %98 = vector.extract_strided_slice %97 {offsets = [0, 0], sizes = [8, 128], strides = [1, 1]} : vector<16x128xf32> to vector<8x128xf32>
    %99 = vector.extract_strided_slice %97 {offsets = [8, 0], sizes = [8, 128], strides = [1, 1]} : vector<16x128xf32> to vector<8x128xf32>
    %100 = vector.extract_strided_slice %9 {offsets = [96, 0], sizes = [32, 128], strides = [1, 1]} : vector<128x128xf32> to vector<32x128xf32>
    %c1_53 = arith.constant 1 : index
    %c0_54 = arith.constant 0 : index
    %c0_55 = arith.constant 0 : index
    %101 = vector.load %arg11[%c1_53, %c0_54, %c0_55] : memref<2x32x8xbf16, #tpu.memory_space<vmem>>, vector<1x32x8xbf16>
    %102 = vector.shape_cast %101 : vector<1x32x8xbf16> to vector<32x8xbf16>
    %103 = arith.truncf %98 : vector<8x128xf32> to vector<8x128xbf16>
    %cst_56 = arith.constant dense<0.000000e+00> : vector<32x128xf32>
    %104 = tpu.matmul %102, %103, %cst_56 {dimension_numbers = #tpu.dot_dimension_numbers<[1], [0], [0], [1], [0, 0, 1, 1], [], []>} : vector<32x8xbf16>, vector<8x128xbf16>, vector<32x128xf32> -> vector<32x128xf32>
    %105 = arith.addf %104, %100 : vector<32x128xf32>
    %cst_57 = arith.constant 0.000000e+00 : f32
    %106 = vector.broadcast %cst_57 : f32 to vector<32x128xf32>
    %107 = arith.maximumf %105, %106 : vector<32x128xf32>
    %c1_58 = arith.constant 1 : index
    %c0_59 = arith.constant 0 : index
    %c0_60 = arith.constant 0 : index
    %108 = vector.load %arg12[%c1_58, %c0_59, %c0_60] : memref<2x16x32xbf16, #tpu.memory_space<vmem>>, vector<1x16x32xbf16>
    %109 = vector.shape_cast %108 : vector<1x16x32xbf16> to vector<16x32xbf16>
    %110 = arith.truncf %107 : vector<32x128xf32> to vector<32x128xbf16>
    %cst_61 = arith.constant dense<0.000000e+00> : vector<16x128xf32>
    %111 = tpu.matmul %109, %110, %cst_61 {dimension_numbers = #tpu.dot_dimension_numbers<[1], [0], [0], [1], [0, 0, 1, 1], [], []>} : vector<16x32xbf16>, vector<32x128xbf16>, vector<16x128xf32> -> vector<16x128xf32>
    %c1_62 = arith.constant 1 : index
    %c0_63 = arith.constant 0 : index
    %c0_64 = arith.constant 0 : index
    %112 = vector.load %arg13[%c1_62, %c0_63, %c0_64] : memref<2x16x1xf32, #tpu.memory_space<vmem>>, vector<1x16x1xf32>
    %113 = vector.shape_cast %112 : vector<1x16x1xf32> to vector<16x1xf32>
    %114 = vector.broadcast %113 : vector<16x1xf32> to vector<16x128xf32>
    %115 = arith.addf %111, %114 : vector<16x128xf32>
    %116 = vector.extract_strided_slice %115 {offsets = [0, 0], sizes = [8, 128], strides = [1, 1]} : vector<16x128xf32> to vector<8x128xf32>
    %117 = math.tanh %116 : vector<8x128xf32>
    %cst_65 = arith.constant 1.900000e+00 : f32
    %118 = vector.broadcast %cst_65 : f32 to vector<8x128xf32>
    %119 = arith.mulf %118, %117 : vector<8x128xf32>
    %cst_66 = arith.constant dense<0.000000e+00> : vector<128xf32>
    %120 = vector.multi_reduction <add>, %119, %cst_66 [0] : vector<8x128xf32> to vector<128xf32>
    %121 = vector.shape_cast %120 : vector<128xf32> to vector<1x128xf32>
    %122 = arith.addf %93, %121 : vector<1x128xf32>
    %123 = math.exp %119 : vector<8x128xf32>
    %124 = arith.mulf %99, %123 : vector<8x128xf32>
    %125 = vector.extract_strided_slice %115 {offsets = [8, 0], sizes = [8, 128], strides = [1, 1]} : vector<16x128xf32> to vector<8x128xf32>
    %126 = arith.addf %124, %125 : vector<8x128xf32>
    %127 = tpu.concatenate %98, %126 in 0 : vector<8x128xf32>, vector<8x128xf32> -> vector<16x128xf32>
    %c0_67 = arith.constant 0 : index
    %c0_68 = arith.constant 0 : index
    %128 = vector.load %arg14[%c0_67, %c0_68] : memref<16x128xf32, #tpu.memory_space<vmem>>, vector<16x128xf32>
    tpu.vector_store %arg14[%c0_67, %c0_68], %127 {strides = array<i32>} : memref<16x128xf32, #tpu.memory_space<vmem>>, vector<16x128xf32>,
    %129 = vector.shape_cast %122 : vector<1x128xf32> to vector<1x128xf32>
    %130 = vector.broadcast %129 : vector<1x128xf32> to vector<8x128xf32>
    %c0_69 = arith.constant 0 : index
    %c0_70 = arith.constant 0 : index
    %131 = vector.load %arg15[%c0_69, %c0_70] : memref<8x128xf32, #tpu.memory_space<vmem>>, vector<8x128xf32>
    tpu.vector_store %arg15[%c0_69, %c0_70], %130 {strides = array<i32>} : memref<8x128xf32, #tpu.memory_space<vmem>>, vector<8x128xf32>,
    return
  }
  func.func @transform_0(%arg0: i32, %arg1: i32) -> (i32, i32) {
    %c0_i32 = arith.constant 0 : i32
    return %arg0, %arg1 : i32, i32
  }
  func.func @transform_1(%arg0: i32, %arg1: i32) -> (i32, i32) {
    %c0_i32 = arith.constant 0 : i32
    return %arg0, %arg1 : i32, i32
  }
  func.func @transform_2(%arg0: i32, %arg1: i32) -> (i32, i32) {
    %c0_i32 = arith.constant 0 : i32
    return %arg0, %arg1 : i32, i32
  }
  func.func @transform_3(%arg0: i32, %arg1: i32) -> (i32, i32, i32) {
    %c0_i32 = arith.constant 0 : i32
    %c0_i32_0 = arith.constant 0 : i32
    %c0_i32_1 = arith.constant 0 : i32
    %c0_i32_2 = arith.constant 0 : i32
    return %c0_i32, %c0_i32_0, %c0_i32_1 : i32, i32, i32
  }
  func.func @transform_4(%arg0: i32, %arg1: i32) -> (i32, i32, i32) {
    %c0_i32 = arith.constant 0 : i32
    %c0_i32_0 = arith.constant 0 : i32
    %c0_i32_1 = arith.constant 0 : i32
    %c0_i32_2 = arith.constant 0 : i32
    return %c0_i32, %c0_i32_0, %c0_i32_1 : i32, i32, i32
  }
  func.func @transform_5(%arg0: i32, %arg1: i32) -> (i32, i32) {
    %c0_i32 = arith.constant 0 : i32
    %c0_i32_0 = arith.constant 0 : i32
    %c0_i32_1 = arith.constant 0 : i32
    return %c0_i32, %c0_i32_0 : i32, i32
  }
  func.func @transform_6(%arg0: i32, %arg1: i32) -> (i32, i32) {
    %c0_i32 = arith.constant 0 : i32
    %c0_i32_0 = arith.constant 0 : i32
    %c0_i32_1 = arith.constant 0 : i32
    return %c0_i32, %c0_i32_0 : i32, i32
  }
  func.func @transform_7(%arg0: i32, %arg1: i32) -> (i32, i32) {
    %c0_i32 = arith.constant 0 : i32
    %c0_i32_0 = arith.constant 0 : i32
    %c0_i32_1 = arith.constant 0 : i32
    return %c0_i32, %c0_i32_0 : i32, i32
  }
  func.func @transform_8(%arg0: i32, %arg1: i32) -> (i32, i32) {
    %c0_i32 = arith.constant 0 : i32
    %c0_i32_0 = arith.constant 0 : i32
    %c0_i32_1 = arith.constant 0 : i32
    return %c0_i32, %c0_i32_0 : i32, i32
  }
  func.func @transform_9(%arg0: i32, %arg1: i32) -> (i32, i32, i32) {
    %c0_i32 = arith.constant 0 : i32
    %c0_i32_0 = arith.constant 0 : i32
    %c0_i32_1 = arith.constant 0 : i32
    %c0_i32_2 = arith.constant 0 : i32
    return %c0_i32, %c0_i32_0, %c0_i32_1 : i32, i32, i32
  }
  func.func @transform_10(%arg0: i32, %arg1: i32) -> (i32, i32, i32) {
    %c0_i32 = arith.constant 0 : i32
    %c0_i32_0 = arith.constant 0 : i32
    %c0_i32_1 = arith.constant 0 : i32
    %c0_i32_2 = arith.constant 0 : i32
    return %c0_i32, %c0_i32_0, %c0_i32_1 : i32, i32, i32
  }
  func.func @transform_11(%arg0: i32, %arg1: i32) -> (i32, i32, i32) {
    %c0_i32 = arith.constant 0 : i32
    %c0_i32_0 = arith.constant 0 : i32
    %c0_i32_1 = arith.constant 0 : i32
    %c0_i32_2 = arith.constant 0 : i32
    return %c0_i32, %c0_i32_0, %c0_i32_1 : i32, i32, i32
  }
  func.func @transform_12(%arg0: i32, %arg1: i32) -> (i32, i32) {
    %c0_i32 = arith.constant 0 : i32
    return %arg0, %arg1 : i32, i32
  }
  func.func @transform_13(%arg0: i32, %arg1: i32) -> (i32, i32) {
    %c0_i32 = arith.constant 0 : i32
    return %arg0, %arg1 : i32, i32
  }
}

</mosaic_0001>

<llo_original>
// kernel: tpu_custom_call.1
$region0: #{tpu_custom_call.1}
  #allocation0 [shape = 'u32[]', space=smem, size = 0x4, offset = 0x4, fixed_abs, tag = 'smem constant byte address 0x4 - core index']
  #allocation1 [shape = 'u32[72,128]{1,0:T(1,128)}', space=vmem, size = 0x9000, scoped, tag = 'internal scratch']
  %s0 = inlined_call_operand.vmem [shape: f32[16,128], index: 0, kind: input, shape index: {}]
  %s1 = inlined_call_operand.vmem [shape: f32[16,128], index: 1, kind: input, shape index: {}]
  %s2 = inlined_call_operand.vmem [shape: f32[16,128], index: 2, kind: input, shape index: {}]
  %s3 = inlined_call_operand.vmem [shape: bf16[3,16,16], index: 3, kind: input, shape index: {}]
  %s4 = inlined_call_operand.vmem [shape: f32[3,16,1], index: 4, kind: input, shape index: {}]
  %s5 = inlined_call_operand.vmem [shape: bf16[128,32], index: 5, kind: input, shape index: {}]
  %s6 = inlined_call_operand.vmem [shape: f32[128,1], index: 6, kind: input, shape index: {}]
  %s7 = inlined_call_operand.vmem [shape: bf16[64,64], index: 7, kind: input, shape index: {}]
  %s8 = inlined_call_operand.vmem [shape: f32[64,1], index: 8, kind: input, shape index: {}]
  %s9 = inlined_call_operand.vmem [shape: bf16[2,32,8], index: 9, kind: input, shape index: {}]
  %s10 = inlined_call_operand.vmem [shape: bf16[2,16,32], index: 10, kind: input, shape index: {}]
  %s11 = inlined_call_operand.vmem [shape: f32[2,16,1], index: 11, kind: input, shape index: {}]
  %s12 = inlined_call_operand.hbm [shape: f32[16,128], index: 12, kind: output, shape index: {0}]
  %s13 = inlined_call_operand.hbm [shape: f32[8,128], index: 13, kind: output, shape index: {1}]
  %14 = xla_tuple %s12, %s13
  %s15 = sld [smem:[#allocation0]]
  $region66: #{tpu_custom_call.1} parent=0
    _
  %s17 = ssub.s32 1, %s15
  %s18 = scalar_select 0, %s17, %s15
  $region1: #{tpu_custom_call.1} parent=0
    #allocation2 [shape = 'u8[8192]{0}', space=vmem, size = 0x2000, scoped, tag = 'output window, operand 0, single buffered']
    #allocation3 [shape = 's32[1]{0}', space=sflag, size = 0x4, scoped, tag = 'scoped memory for tpu_custom_call.1']
    #allocation4 [shape = 'u8[4096]{0}', space=vmem, size = 0x1000, scoped, tag = 'output window, operand 1, single buffered']
    #allocation5 [shape = 's32[1]{0}', space=sflag, size = 0x4, scoped, tag = 'scoped memory for tpu_custom_call.1']
    %19 = vsyncpa [#allocation3], 0
    %20 = vsyncpa [#allocation5], 0
    // Predicated region
    $region2: #{tpu_custom_call.1} parent=1 // pred_check
      _
    $region3: #{tpu_custom_call.1} parent=1 // pred_check_branch
      %22 = sbr.rel (0) target = $region5
    $region4: #{tpu_custom_call.1} parent=1 // pred_region
      _
    $region5: #{tpu_custom_call.1} parent=1 // pred_fallthru
      _
    // Predicated region
    $region6: #{tpu_custom_call.1} parent=1 // pred_check
      _
    $region7: #{tpu_custom_call.1} parent=1 // pred_check_branch
      %24 = sbr.rel (0) target = $region9
    $region8: #{tpu_custom_call.1} parent=1 // pred_region
      _
    $region9: #{tpu_custom_call.1} parent=1 // pred_fallthru
      _
    // Predicated region
    $region10: #{tpu_custom_call.1} parent=1 // pred_check
      _
    $region11: #{tpu_custom_call.1} parent=1 // pred_check_branch
      %26 = sbr.rel (0) target = $region13
    $region12: #{tpu_custom_call.1} parent=1 // pred_region
      _
    $region13: #{tpu_custom_call.1} parent=1 // pred_fallthru
      _
    // Predicated region
    $region14: #{tpu_custom_call.1} parent=1 // pred_check
      _
    $region15: #{tpu_custom_call.1} parent=1 // pred_check_branch
      %28 = sbr.rel (0) target = $region17
    $region16: #{tpu_custom_call.1} parent=1 // pred_region
      _
    $region17: #{tpu_custom_call.1} parent=1 // pred_fallthru
      _
    // Predicated region
    $region18: #{tpu_custom_call.1} parent=1 // pred_check
      _
    $region19: #{tpu_custom_call.1} parent=1 // pred_check_branch
      %30 = sbr.rel (0) target = $region21
    $region20: #{tpu_custom_call.1} parent=1 // pred_region
      _
    $region21: #{tpu_custom_call.1} parent=1 // pred_fallthru
      _
    // Predicated region
    $region22: #{tpu_custom_call.1} parent=1 // pred_check
      _
    $region23: #{tpu_custom_call.1} parent=1 // pred_check_branch
      %32 = sbr.rel (0) target = $region25
    $region24: #{tpu_custom_call.1} parent=1 // pred_region
      _
    $region25: #{tpu_custom_call.1} parent=1 // pred_fallthru
      _
    // Predicated region
    $region26: #{tpu_custom_call.1} parent=1 // pred_check
      _
    $region27: #{tpu_custom_call.1} parent=1 // pred_check_branch
      %34 = sbr.rel (0) target = $region29
    $region28: #{tpu_custom_call.1} parent=1 // pred_region
      _
    $region29: #{tpu_custom_call.1} parent=1 // pred_fallthru
      _
    // Predicated region
    $region30: #{tpu_custom_call.1} parent=1 // pred_check
      _
    $region31: #{tpu_custom_call.1} parent=1 // pred_check_branch
      %36 = sbr.rel (0) target = $region33
    $region32: #{tpu_custom_call.1} parent=1 // pred_region
      _
    $region33: #{tpu_custom_call.1} parent=1 // pred_fallthru
      _
    // Predicated region
    $region34: #{tpu_custom_call.1} parent=1 // pred_check
      _
    $region35: #{tpu_custom_call.1} parent=1 // pred_check_branch
      %38 = sbr.rel (0) target = $region37
    $region36: #{tpu_custom_call.1} parent=1 // pred_region
      _
    $region37: #{tpu_custom_call.1} parent=1 // pred_fallthru
      _
    // Predicated region
    $region38: #{tpu_custom_call.1} parent=1 // pred_check
      _
    $region39: #{tpu_custom_call.1} parent=1 // pred_check_branch
      %40 = sbr.rel (0) target = $region41
    $region40: #{tpu_custom_call.1} parent=1 // pred_region
      _
    $region41: #{tpu_custom_call.1} parent=1 // pred_fallthru
      _
    // Predicated region
    $region42: #{tpu_custom_call.1} parent=1 // pred_check
      _
    $region43: #{tpu_custom_call.1} parent=1 // pred_check_branch
      %42 = sbr.rel (0) target = $region45
    $region44: #{tpu_custom_call.1} parent=1 // pred_region
      _
    $region45: #{tpu_custom_call.1} parent=1 // pred_fallthru
      _
    // Predicated region
    $region46: #{tpu_custom_call.1} parent=1 // pred_check
      _
    $region47: #{tpu_custom_call.1} parent=1 // pred_check_branch
      %44 = sbr.rel (0) target = $region49
    $region48: #{tpu_custom_call.1} parent=1 // pred_region
      _
    $region49: #{tpu_custom_call.1} parent=1 // pred_fallthru
      _
    %v46 = vld [vmem:[%s0] sm:$0xff]
    %v47 = vld [vmem:[%s0 + $0x8] sm:$0xff]
    %v48 = vld [vmem:[%s1] sm:$0xff]
    %v49 = vld [vmem:[%s1 + $0x8] sm:$0xff]
    %v50 = vld [vmem:[%s2] sm:$0xff]
    %v51 = vld [vmem:[%s2 + $0x8] sm:$0xff]
    %v52 = vld [vmem:[%s5] sm:$0xf]
    %v53 = vld [vmem:[%s5 + $0x4] sm:$0xf]
    %v54 = vld [vmem:[%s5 + $0x8] sm:$0xf]
    %v55 = vld [vmem:[%s5 + $0xc] sm:$0xf]
    %v56 = vld [vmem:[%s5 + $0x10] sm:$0xf]
    %v57 = vld [vmem:[%s5 + $0x14] sm:$0xf]
    %v58 = vld [vmem:[%s5 + $0x18] sm:$0xf]
    %v59 = vld [vmem:[%s5 + $0x1c] sm:$0xf]
    %v60 = vld [vmem:[%s5 + $0x20] sm:$0xf]
    %v61 = vld [vmem:[%s5 + $0x24] sm:$0xf]
    %v62 = vld [vmem:[%s5 + $0x28] sm:$0xf]
    %v63 = vld [vmem:[%s5 + $0x2c] sm:$0xf]
    %v64 = vld [vmem:[%s5 + $0x30] sm:$0xf]
    %v65 = vld [vmem:[%s5 + $0x34] sm:$0xf]
    %v66 = vld [vmem:[%s5 + $0x38] sm:$0xf]
    %v67 = vld [vmem:[%s5 + $0x3c] sm:$0xf]
    %v68 = vpack.c.bf16 %v49, %v48
    %v69 = vpack.c.bf16 %v51, %v50
    %v70 = vld [vmem:[%s6] sm:$0xff]
    %v71 = vld [vmem:[%s6 + $0x8] sm:$0xff]
    %v72 = vld [vmem:[%s6 + $0x10] sm:$0xff]
    %v73 = vld [vmem:[%s6 + $0x18] sm:$0xff]
    %v74 = vld [vmem:[%s6 + $0x20] sm:$0xff]
    %v75 = vld [vmem:[%s6 + $0x28] sm:$0xff]
    %v76 = vld [vmem:[%s6 + $0x30] sm:$0xff]
    %v77 = vld [vmem:[%s6 + $0x38] sm:$0xff]
    %v78 = vld [vmem:[%s6 + $0x40] sm:$0xff]
    %v79 = vld [vmem:[%s6 + $0x48] sm:$0xff]
    %v80 = vld [vmem:[%s6 + $0x50] sm:$0xff]
    %v81 = vld [vmem:[%s6 + $0x58] sm:$0xff]
    %v82 = vld [vmem:[%s6 + $0x60] sm:$0xff]
    %v83 = vld [vmem:[%s6 + $0x68] sm:$0xff]
    %v84 = vld [vmem:[%s6 + $0x70] sm:$0xff]
    %v85 = vld [vmem:[%s6 + $0x78] sm:$0xff]
    %87 = vset.pattern.permute.xlu0 0
    %88 = vperm.xlu0 %87, %v70
    %v89 = vpop.permute.xlu0 %88
    %92 = vset.pattern.permute.xlu0 0
    %93 = vperm.xlu0 %92, %v71
    %v94 = vpop.permute.xlu0 %93
    %97 = vset.pattern.permute.xlu0 0
    %98 = vperm.xlu0 %97, %v72
    %v99 = vpop.permute.xlu0 %98
    %102 = vset.pattern.permute.xlu0 0
    %103 = vperm.xlu0 %102, %v73
    %v104 = vpop.permute.xlu0 %103
    %107 = vset.pattern.permute.xlu0 0
    %108 = vperm.xlu0 %107, %v74
    %v109 = vpop.permute.xlu0 %108
    %112 = vset.pattern.permute.xlu0 0
    %113 = vperm.xlu0 %112, %v75
    %v114 = vpop.permute.xlu0 %113
    %117 = vset.pattern.permute.xlu0 0
    %118 = vperm.xlu0 %117, %v76
    %v119 = vpop.permute.xlu0 %118
    %122 = vset.pattern.permute.xlu0 0
    %123 = vperm.xlu0 %122, %v77
    %v124 = vpop.permute.xlu0 %123
    %127 = vset.pattern.permute.xlu0 0
    %128 = vperm.xlu0 %127, %v78
    %v129 = vpop.permute.xlu0 %128
    %132 = vset.pattern.permute.xlu0 0
    %133 = vperm.xlu0 %132, %v79
    %v134 = vpop.permute.xlu0 %133
    %137 = vset.pattern.permute.xlu0 0
    %138 = vperm.xlu0 %137, %v80
    %v139 = vpop.permute.xlu0 %138
    %142 = vset.pattern.permute.xlu0 0
    %143 = vperm.xlu0 %142, %v81
    %v144 = vpop.permute.xlu0 %143
    %147 = vset.pattern.permute.xlu0 0
    %148 = vperm.xlu0 %147, %v82
    %v149 = vpop.permute.xlu0 %148
    %152 = vset.pattern.permute.xlu0 0
    %153 = vperm.xlu0 %152, %v83
    %v154 = vpop.permute.xlu0 %153
    %157 = vset.pattern.permute.xlu0 0
    %158 = vperm.xlu0 %157, %v84
    %v159 = vpop.permute.xlu0 %158
    %162 = vset.pattern.permute.xlu0 0
    %163 = vperm.xlu0 %162, %v85
    %v164 = vpop.permute.xlu0 %163
    %v182 = vunpack.c.l.b16 %v52
    %v183 = vunpack.c.l.b16 %v53
    %v184 = vunpack.c.l.b16 %v54
    %v185 = vunpack.c.l.b16 %v55
    %v186 = vunpack.c.l.b16 %v56
    %v187 = vunpack.c.l.b16 %v57
    %v188 = vunpack.c.l.b16 %v58
    %v189 = vunpack.c.l.b16 %v59
    %v190 = vunpack.c.l.b16 %v60
    %v191 = vunpack.c.l.b16 %v61
    %v192 = vunpack.c.l.b16 %v62
    %v193 = vunpack.c.l.b16 %v63
    %v194 = vunpack.c.l.b16 %v64
    %v195 = vunpack.c.l.b16 %v65
    %v196 = vunpack.c.l.b16 %v66
    %v197 = vunpack.c.l.b16 %v67
    %v198 = vpack.c.b16 %v183, %v182
    %v199 = vpack.c.b16 %v185, %v184
    %v200 = vpack.c.b16 %v187, %v186
    %v201 = vpack.c.b16 %v189, %v188
    %v202 = vpack.c.b16 %v191, %v190
    %v203 = vpack.c.b16 %v193, %v192
    %v204 = vpack.c.b16 %v195, %v194
    %v205 = vpack.c.b16 %v197, %v196
    %vm206 = vcmask 261120
    %v208 = vsel %vm206, %v198, 0
    %v211 = vsel %vm206, %v199, 0
    %v214 = vsel %vm206, %v200, 0
    %v217 = vsel %vm206, %v201, 0
    %v220 = vsel %vm206, %v202, 0
    %v223 = vsel %vm206, %v203, 0
    %v226 = vsel %vm206, %v204, 0
    %v229 = vsel %vm206, %v205, 0
    %231 = vmatpush.bf16.msra.mxu0 0
    %232 = vmatpush.bf16.msra.mxu0 0
    %233 = vmatpush.bf16.msra.mxu0 0
    %234 = vmatpush.bf16.msra.mxu0 0
    %235 = vmatpush.bf16.msra.mxu0 0
    %236 = vmatpush.bf16.msra.mxu0 0
    %237 = vmatpush.bf16.msra.mxu0 %v69
    %238 = vmatpush.bf16.msra.mxu0 %v68
    %239 = vmatmul.bf16.gmra.mxu0 %v208
    %v240 = vpop.f32.mrf.mxu0
    %v241 = vadd.f32 %v89, %v240
    %v242 = vpop.f32.mrf.mxu0
    %v243 = vadd.f32 %v94, %v242
    %244 = vmatmul.bf16.gmra.mxu0 %v211
    %v245 = vpop.f32.mrf.mxu0
    %v246 = vadd.f32 %v99, %v245
    %v247 = vpop.f32.mrf.mxu0
    %v248 = vadd.f32 %v104, %v247
    %249 = vmatmul.bf16.gmra.mxu0 %v214
    %v250 = vpop.f32.mrf.mxu0
    %v251 = vadd.f32 %v109, %v250
    %v252 = vpop.f32.mrf.mxu0
    %v253 = vadd.f32 %v114, %v252
    %254 = vmatmul.bf16.gmra.mxu0 %v217
    %v255 = vpop.f32.mrf.mxu0
    %v256 = vadd.f32 %v119, %v255
    %v257 = vpop.f32.mrf.mxu0
    %v258 = vadd.f32 %v124, %v257
    %259 = vmatmul.bf16.gmra.mxu0 %v220
    %v260 = vpop.f32.mrf.mxu0
    %v261 = vadd.f32 %v129, %v260
    %v262 = vpop.f32.mrf.mxu0
    %v263 = vadd.f32 %v134, %v262
    %264 = vmatmul.bf16.gmra.mxu0 %v223
    %v265 = vpop.f32.mrf.mxu0
    %v266 = vadd.f32 %v139, %v265
    %v267 = vpop.f32.mrf.mxu0
    %v268 = vadd.f32 %v144, %v267
    %269 = vmatmul.bf16.gmra.mxu0 %v226
    %v270 = vpop.f32.mrf.mxu0
    %v271 = vadd.f32 %v149, %v270
    %v272 = vpop.f32.mrf.mxu0
    %v273 = vadd.f32 %v154, %v272
    %274 = vmatmul.bf16.gmra.mxu0 %v229
    %v275 = vpop.f32.mrf.mxu0
    %v276 = vadd.f32 %v159, %v275
    %v277 = vpop.f32.mrf.mxu0
    %v278 = vadd.f32 %v164, %v277
    %279 = vdwg.mxu0
    %v280 = vmax.f32 %v241, 0.0
    %v281 = vmax.f32 %v243, 0.0
    %v282 = vmax.f32 %v246, 0.0
    %v283 = vmax.f32 %v248, 0.0
    %v284 = vmax.f32 %v251, 0.0
    %v285 = vmax.f32 %v253, 0.0
    %v286 = vmax.f32 %v256, 0.0
    %v287 = vmax.f32 %v258, 0.0
    %v288 = vld [vmem:[%s7] sm:$0xf]
    %v289 = vld [vmem:[%s7 + $0x4] sm:$0xf]
    %v290 = vld [vmem:[%s7 + $0x8] sm:$0xf]
    %v291 = vld [vmem:[%s7 + $0xc] sm:$0xf]
    %v292 = vld [vmem:[%s7 + $0x10] sm:$0xf]
    %v293 = vld [vmem:[%s7 + $0x14] sm:$0xf]
    %v294 = vld [vmem:[%s7 + $0x18] sm:$0xf]
    %v295 = vld [vmem:[%s7 + $0x1c] sm:$0xf]
    %v296 = vpack.c.bf16 %v281, %v280
    %v297 = vpack.c.bf16 %v283, %v282
    %v298 = vpack.c.bf16 %v285, %v284
    %v299 = vpack.c.bf16 %v287, %v286
    %v300 = vld [vmem:[%s8] sm:$0xff]
    %v301 = vld [vmem:[%s8 + $0x8] sm:$0xff]
    %v302 = vld [vmem:[%s8 + $0x10] sm:$0xff]
    %v303 = vld [vmem:[%s8 + $0x18] sm:$0xff]
    %v304 = vld [vmem:[%s8 + $0x20] sm:$0xff]
    %v305 = vld [vmem:[%s8 + $0x28] sm:$0xff]
    %v306 = vld [vmem:[%s8 + $0x30] sm:$0xff]
    %v307 = vld [vmem:[%s8 + $0x38] sm:$0xff]
    %309 = vset.pattern.permute.xlu0 0
    %310 = vperm.xlu0 %309, %v300
    %v311 = vpop.permute.xlu0 %310
    %314 = vset.pattern.permute.xlu0 0
    %315 = vperm.xlu0 %314, %v301
    %v316 = vpop.permute.xlu0 %315
    %319 = vset.pattern.permute.xlu0 0
    %320 = vperm.xlu0 %319, %v302
    %v321 = vpop.permute.xlu0 %320
    %324 = vset.pattern.permute.xlu0 0
    %325 = vperm.xlu0 %324, %v303
    %v326 = vpop.permute.xlu0 %325
    %329 = vset.pattern.permute.xlu0 0
    %330 = vperm.xlu0 %329, %v304
    %v331 = vpop.permute.xlu0 %330
    %334 = vset.pattern.permute.xlu0 0
    %335 = vperm.xlu0 %334, %v305
    %v336 = vpop.permute.xlu0 %335
    %339 = vset.pattern.permute.xlu0 0
    %340 = vperm.xlu0 %339, %v306
    %v341 = vpop.permute.xlu0 %340
    %344 = vset.pattern.permute.xlu0 0
    %345 = vperm.xlu0 %344, %v307
    %v346 = vpop.permute.xlu0 %345
    %v356 = vunpack.c.l.b16 %v288
    %v357 = vunpack.c.l.b16 %v289
    %v358 = vunpack.c.l.b16 %v290
    %v359 = vunpack.c.l.b16 %v291
    %v360 = vunpack.c.l.b16 %v292
    %v361 = vunpack.c.l.b16 %v293
    %v362 = vunpack.c.l.b16 %v294
    %v363 = vunpack.c.l.b16 %v295
    %v364 = vpack.c.b16 %v357, %v356
    %v365 = vpack.c.b16 %v359, %v358
    %v366 = vpack.c.b16 %v361, %v360
    %v367 = vpack.c.b16 %v363, %v362
    %vm368 = vcmask 523264
    %v370 = vsel %vm368, %v364, 0
    %v373 = vsel %vm368, %v365, 0
    %v376 = vsel %vm368, %v366, 0
    %v379 = vsel %vm368, %v367, 0
    %381 = vmatpush.bf16.msra.mxu0 0
    %382 = vmatpush.bf16.msra.mxu0 0
    %383 = vmatpush.bf16.msra.mxu0 0
    %384 = vmatpush.bf16.msra.mxu0 0
    %385 = vmatpush.bf16.msra.mxu0 %v299
    %386 = vmatpush.bf16.msra.mxu0 %v298
    %387 = vmatpush.bf16.msra.mxu0 %v297
    %388 = vmatpush.bf16.msra.mxu0 %v296
    %389 = vmatmul.bf16.gmra.mxu0 %v370
    %v390 = vpop.f32.mrf.mxu0
    %v391 = vadd.f32 %v311, %v390
    %v392 = vpop.f32.mrf.mxu0
    %v393 = vadd.f32 %v316, %v392
    %394 = vmatmul.bf16.gmra.mxu0 %v373
    %v395 = vpop.f32.mrf.mxu0
    %v396 = vadd.f32 %v321, %v395
    %v397 = vpop.f32.mrf.mxu0
    %v398 = vadd.f32 %v326, %v397
    %399 = vmatmul.bf16.gmra.mxu0 %v376
    %v400 = vpop.f32.mrf.mxu0
    %v401 = vadd.f32 %v331, %v400
    %v402 = vpop.f32.mrf.mxu0
    %v403 = vadd.f32 %v336, %v402
    %404 = vmatmul.bf16.gmra.mxu0 %v379
    %v405 = vpop.f32.mrf.mxu0
    %v406 = vadd.f32 %v341, %v405
    %v407 = vpop.f32.mrf.mxu0
    %v408 = vadd.f32 %v346, %v407
    %409 = vdwg.mxu0
    %v410 = vld [vmem:[%s3] sm:$0xf]
    %v411 = vld [vmem:[%s3 + $0x4] sm:$0xf]
    %v412 = vpack.c.bf16 %v47, %v46
    %v413 = vld [vmem:[%s4] sm:$0xff]
    %v414 = vld [vmem:[%s4 + $0x8] sm:$0xff]
    %416 = vset.pattern.permute.xlu0 0
    %417 = vperm.xlu0 %416, %v413
    %v418 = vpop.permute.xlu0 %417
    %421 = vset.pattern.permute.xlu0 0
    %422 = vperm.xlu0 %421, %v414
    %v423 = vpop.permute.xlu0 %422
    %v427 = vunpack.c.l.b16 %v410
    %v428 = vunpack.c.l.b16 %v411
    %v429 = vpack.c.b16 %v428, %v427
    %vm430 = vcmask 130048
    %v432 = vsel %vm430, %v429, 0
    %434 = vmatpush.bf16.msra.mxu0 0
    %435 = vmatpush.bf16.msra.mxu0 0
    %436 = vmatpush.bf16.msra.mxu0 0
    %437 = vmatpush.bf16.msra.mxu0 0
    %438 = vmatpush.bf16.msra.mxu0 0
    %439 = vmatpush.bf16.msra.mxu0 0
    %440 = vmatpush.bf16.msra.mxu0 0
    %441 = vmatpush.bf16.msra.mxu0 %v412
    %442 = vmatmul.bf16.gmra.mxu0 %v432
    %v443 = vpop.f32.mrf.mxu0
    %v444 = vadd.f32 %v418, %v443
    %v445 = vpop.f32.mrf.mxu0
    %v446 = vadd.f32 %v423, %v445
    %447 = vdwg.mxu0
    %s448 = scalar_lea.vmem %s3, 8
    %v449 = vld [vmem:[%s448] sm:$0xf]
    %v450 = vld [vmem:[%s448 + $0x4] sm:$0xf]
    %v451 = vpack.c.bf16 %v446, %v444
    %s452 = scalar_lea.vmem %s4, 16
    %v453 = vld [vmem:[%s452] sm:$0xff]
    %v454 = vld [vmem:[%s452 + $0x8] sm:$0xff]
    %456 = vset.pattern.permute.xlu0 0
    %457 = vperm.xlu0 %456, %v453
    %v458 = vpop.permute.xlu0 %457
    %461 = vset.pattern.permute.xlu0 0
    %462 = vperm.xlu0 %461, %v454
    %v463 = vpop.permute.xlu0 %462
    %v467 = vunpack.c.l.b16 %v449
    %v468 = vunpack.c.l.b16 %v450
    %v469 = vpack.c.b16 %v468, %v467
    %v471 = vsel %vm430, %v469, 0
    %473 = vmatpush.bf16.msra.mxu0 0
    %474 = vmatpush.bf16.msra.mxu0 0
    %475 = vmatpush.bf16.msra.mxu0 0
    %476 = vmatpush.bf16.msra.mxu0 0
    %477 = vmatpush.bf16.msra.mxu0 0
    %478 = vmatpush.bf16.msra.mxu0 0
    %479 = vmatpush.bf16.msra.mxu0 0
    %480 = vmatpush.bf16.msra.mxu0 %v451
    %481 = vmatmul.bf16.gmra.mxu0 %v471
    %v482 = vpop.f32.mrf.mxu0
    %v483 = vadd.f32 %v458, %v482
    %v484 = vpop.f32.mrf.mxu0
    %v485 = vadd.f32 %v463, %v484
    %486 = vdwg.mxu0
    %v487 = vtanh.pop %v391
    %v488 = vtanh.pop %v393
    %v489 = vmul.f32 %v487, 1.9
    %v490 = vmul.f32 %v488, 1.9
    %v491 = vadd.f32 %v489, %v490
    %v492 = vrot.slane %v491, 4
    %v493 = vadd.f32 %v491, %v492
    %v494 = vrot.slane %v493, 2
    %v495 = vadd.f32 %v493, %v494
    %v496 = vrot.slane %v495, 1
    %v497 = vadd.f32 %v495, %v496
    %v498 = vadd.f32 %v497, 0.0
    %v499 = vmul.f32 %v489, 1.442695
    %v500 = vpow.pop %v499
    %v501 = vmul.f32 %v490, 1.442695
    %v502 = vpow.pop %v501
    %v503 = vmul.f32 %v483, %v500
    %v504 = vmul.f32 %v485, %v502
    %v505 = vadd.f32 %v503, %v396
    %v506 = vadd.f32 %v504, %v398
    %v507 = vld [vmem:[%s9] sm:$0xf]
    %v508 = vld [vmem:[%s9 + $0x4] sm:$0xf]
    %v509 = vld [vmem:[%s9 + $0x8] sm:$0xf]
    %v510 = vld [vmem:[%s9 + $0xc] sm:$0xf]
    %v511 = vpack.c.bf16 %v505, %v505
    %v516 = vunpack.c.l.b16 %v507
    %v517 = vunpack.c.l.b16 %v508
    %v518 = vunpack.c.l.b16 %v509
    %v519 = vunpack.c.l.b16 %v510
    %v520 = vpack.c.b16 %v517, %v516
    %v521 = vpack.c.b16 %v519, %v518
    %vm522 = vcmask 64512
    %v524 = vsel %vm522, %v520, 0
    %v527 = vsel %vm522, %v521, 0
    %vm529 = vcmask 1043456
    %v531 = vsel %vm529, %v511, 0
    %533 = vmatpush.bf16.msra.mxu0 0
    %534 = vmatpush.bf16.msra.mxu0 0
    %535 = vmatpush.bf16.msra.mxu0 0
    %536 = vmatpush.bf16.msra.mxu0 0
    %537 = vmatpush.bf16.msra.mxu0 0
    %538 = vmatpush.bf16.msra.mxu0 0
    %539 = vmatpush.bf16.msra.mxu0 0
    %540 = vmatpush.bf16.msra.mxu0 %v531
    %541 = vmatmul.bf16.gmra.mxu0 %v524
    %v542 = vpop.f32.mrf.mxu0
    %v543 = vadd.f32 %v261, %v542
    %v544 = vpop.f32.mrf.mxu0
    %v545 = vadd.f32 %v263, %v544
    %546 = vmatmul.bf16.gmra.mxu0 %v527
    %v547 = vpop.f32.mrf.mxu0
    %v548 = vadd.f32 %v266, %v547
    %v549 = vpop.f32.mrf.mxu0
    %v550 = vadd.f32 %v268, %v549
    %551 = vdwg.mxu0
    %v552 = vmax.f32 %v543, 0.0
    %v553 = vmax.f32 %v545, 0.0
    %v554 = vmax.f32 %v548, 0.0
    %v555 = vmax.f32 %v550, 0.0
    %v556 = vld [vmem:[%s10] sm:$0xf]
    %v557 = vld [vmem:[%s10 + $0x4] sm:$0xf]
    %v558 = vpack.c.bf16 %v553, %v552
    %v559 = vpack.c.bf16 %v555, %v554
    %v560 = vld [vmem:[%s11] sm:$0xff]
    %v561 = vld [vmem:[%s11 + $0x8] sm:$0xff]
    %563 = vset.pattern.permute.xlu0 0
    %564 = vperm.xlu0 %563, %v560
    %v565 = vpop.permute.xlu0 %564
    %568 = vset.pattern.permute.xlu0 0
    %569 = vperm.xlu0 %568, %v561
    %v570 = vpop.permute.xlu0 %569
    %v574 = vunpack.c.l.b16 %v556
    %v575 = vunpack.c.l.b16 %v557
    %v576 = vpack.c.b16 %v575, %v574
    %v578 = vsel %vm206, %v576, 0
    %580 = vmatpush.bf16.msra.mxu0 0
    %581 = vmatpush.bf16.msra.mxu0 0
    %582 = vmatpush.bf16.msra.mxu0 0
    %583 = vmatpush.bf16.msra.mxu0 0
    %584 = vmatpush.bf16.msra.mxu0 0
    %585 = vmatpush.bf16.msra.mxu0 0
    %586 = vmatpush.bf16.msra.mxu0 %v559
    %587 = vmatpush.bf16.msra.mxu0 %v558
    %588 = vmatmul.bf16.gmra.mxu0 %v578
    %v589 = vpop.f32.mrf.mxu0
    %v590 = vadd.f32 %v565, %v589
    %v591 = vpop.f32.mrf.mxu0
    %v592 = vadd.f32 %v570, %v591
    %593 = vdwg.mxu0
    %v594 = vtanh.pop %v590
    %v595 = vmul.f32 %v594, 1.9
    %v596 = vrot.slane %v595, 4
    %v597 = vadd.f32 %v595, %v596
    %v598 = vrot.slane %v597, 2
    %v599 = vadd.f32 %v597, %v598
    %v600 = vrot.slane %v599, 1
    %v601 = vadd.f32 %v599, %v600
    %v602 = vadd.f32 %v498, %v601
    %v603 = vmul.f32 %v595, 1.442695
    %v604 = vpow.pop %v603
    %v605 = vmul.f32 %v506, %v604
    %v606 = vadd.f32 %v605, %v592
    %s607 = scalar_lea.vmem %s3, 16
    %v608 = vld [vmem:[%s607] sm:$0xf]
    %v609 = vld [vmem:[%s607 + $0x4] sm:$0xf]
    %v610 = vpack.c.bf16 %v606, %v505
    %s611 = scalar_lea.vmem %s4, 32
    %v612 = vld [vmem:[%s611] sm:$0xff]
    %v613 = vld [vmem:[%s611 + $0x8] sm:$0xff]
    %615 = vset.pattern.permute.xlu0 0
    %616 = vperm.xlu0 %615, %v612
    %v617 = vpop.permute.xlu0 %616
    %620 = vset.pattern.permute.xlu0 0
    %621 = vperm.xlu0 %620, %v613
    %v622 = vpop.permute.xlu0 %621
    %v626 = vunpack.c.l.b16 %v608
    %v627 = vunpack.c.l.b16 %v609
    %v628 = vpack.c.b16 %v627, %v626
    %v630 = vsel %vm430, %v628, 0
    %632 = vmatpush.bf16.msra.mxu0 0
    %633 = vmatpush.bf16.msra.mxu0 0
    %634 = vmatpush.bf16.msra.mxu0 0
    %635 = vmatpush.bf16.msra.mxu0 0
    %636 = vmatpush.bf16.msra.mxu0 0
    %637 = vmatpush.bf16.msra.mxu0 0
    %638 = vmatpush.bf16.msra.mxu0 0
    %639 = vmatpush.bf16.msra.mxu0 %v610
    %640 = vmatmul.bf16.gmra.mxu0 %v630
    %v641 = vpop.f32.mrf.mxu0
    %v642 = vadd.f32 %v617, %v641
    %v643 = vpop.f32.mrf.mxu0
    %v644 = vadd.f32 %v622, %v643
    %645 = vdwg.mxu0
    %v646 = vtanh.pop %v401
    %v647 = vtanh.pop %v403
    %v648 = vmul.f32 %v646, 1.9
    %v649 = vmul.f32 %v647, 1.9
    %v650 = vadd.f32 %v648, %v649
    %v651 = vrot.slane %v650, 4
    %v652 = vadd.f32 %v650, %v651
    %v653 = vrot.slane %v652, 2
    %v654 = vadd.f32 %v652, %v653
    %v655 = vrot.slane %v654, 1
    %v656 = vadd.f32 %v654, %v655
    %v657 = vadd.f32 %v602, %v656
    %v658 = vmul.f32 %v648, 1.442695
    %v659 = vpow.pop %v658
    %v660 = vmul.f32 %v649, 1.442695
    %v661 = vpow.pop %v660
    %v662 = vmul.f32 %v642, %v659
    %v663 = vmul.f32 %v644, %v661
    %v664 = vadd.f32 %v662, %v406
    %v665 = vadd.f32 %v663, %v408
    %s666 = scalar_lea.vmem %s9, 16
    %v667 = vld [vmem:[%s666] sm:$0xf]
    %v668 = vld [vmem:[%s666 + $0x4] sm:$0xf]
    %v669 = vld [vmem:[%s666 + $0x8] sm:$0xf]
    %v670 = vld [vmem:[%s666 + $0xc] sm:$0xf]
    %v671 = vpack.c.bf16 %v664, %v664
    %v676 = vunpack.c.l.b16 %v667
    %v677 = vunpack.c.l.b16 %v668
    %v678 = vunpack.c.l.b16 %v669
    %v679 = vunpack.c.l.b16 %v670
    %v680 = vpack.c.b16 %v677, %v676
    %v681 = vpack.c.b16 %v679, %v678
    %v683 = vsel %vm522, %v680, 0
    %v686 = vsel %vm522, %v681, 0
    %v689 = vsel %vm529, %v671, 0
    %691 = vmatpush.bf16.msra.mxu0 0
    %692 = vmatpush.bf16.msra.mxu0 0
    %693 = vmatpush.bf16.msra.mxu0 0
    %694 = vmatpush.bf16.msra.mxu0 0
    %695 = vmatpush.bf16.msra.mxu0 0
    %696 = vmatpush.bf16.msra.mxu0 0
    %697 = vmatpush.bf16.msra.mxu0 0
    %698 = vmatpush.bf16.msra.mxu0 %v689
    %699 = vmatmul.bf16.gmra.mxu0 %v683
    %v700 = vpop.f32.mrf.mxu0
    %v701 = vadd.f32 %v271, %v700
    %v702 = vpop.f32.mrf.mxu0
    %v703 = vadd.f32 %v273, %v702
    %704 = vmatmul.bf16.gmra.mxu0 %v686
    %v705 = vpop.f32.mrf.mxu0
    %v706 = vadd.f32 %v276, %v705
    %v707 = vpop.f32.mrf.mxu0
    %v708 = vadd.f32 %v278, %v707
    %709 = vdwg.mxu0
    %v710 = vmax.f32 %v701, 0.0
    %v711 = vmax.f32 %v703, 0.0
    %v712 = vmax.f32 %v706, 0.0
    %v713 = vmax.f32 %v708, 0.0
    %s714 = scalar_lea.vmem %s10, 8
    %v715 = vld [vmem:[%s714] sm:$0xf]
    %v716 = vld [vmem:[%s714 + $0x4] sm:$0xf]
    %v717 = vpack.c.bf16 %v711, %v710
    %v718 = vpack.c.bf16 %v713, %v712
    %s719 = scalar_lea.vmem %s11, 16
    %v720 = vld [vmem:[%s719] sm:$0xff]
    %v721 = vld [vmem:[%s719 + $0x8] sm:$0xff]
    %723 = vset.pattern.permute.xlu0 0
    %724 = vperm.xlu0 %723, %v720
    %v725 = vpop.permute.xlu0 %724
    %728 = vset.pattern.permute.xlu0 0
    %729 = vperm.xlu0 %728, %v721
    %v730 = vpop.permute.xlu0 %729
    %v734 = vunpack.c.l.b16 %v715
    %v735 = vunpack.c.l.b16 %v716
    %v736 = vpack.c.b16 %v735, %v734
    %v738 = vsel %vm206, %v736, 0
    %740 = vmatpush.bf16.msra.mxu0 0
    %741 = vmatpush.bf16.msra.mxu0 0
    %742 = vmatpush.bf16.msra.mxu0 0
    %743 = vmatpush.bf16.msra.mxu0 0
    %744 = vmatpush.bf16.msra.mxu0 0
    %745 = vmatpush.bf16.msra.mxu0 0
    %746 = vmatpush.bf16.msra.mxu0 %v718
    %747 = vmatpush.bf16.msra.mxu0 %v717
    %748 = vmatmul.bf16.gmra.mxu0 %v738
    %v749 = vpop.f32.mrf.mxu0
    %v750 = vadd.f32 %v725, %v749
    %v751 = vpop.f32.mrf.mxu0
    %v752 = vadd.f32 %v730, %v751
    %753 = vdwg.mxu0
    %v754 = vtanh.pop %v750
    %v755 = vmul.f32 %v754, 1.9
    %v756 = vrot.slane %v755, 4
    %v757 = vadd.f32 %v755, %v756
    %v758 = vrot.slane %v757, 2
    %v759 = vadd.f32 %v757, %v758
    %v760 = vrot.slane %v759, 1
    %v761 = vadd.f32 %v759, %v760
    %v762 = vadd.f32 %v657, %v761
    %v763 = vmul.f32 %v755, 1.442695
    %v764 = vpow.pop %v763
    %v765 = vmul.f32 %v665, %v764
    %v766 = vadd.f32 %v765, %v752
    %767 = vst [vmem:[#allocation2] sm:$0xff] %v664
    %768 = vst [vmem:[#allocation2 + $0x8] sm:$0xff] %v766
    %769 = vst [vmem:[#allocation4] sm:$0xff] %v762
    // Predicated region
    $region50: #{tpu_custom_call.1} parent=1 // pred_check
      _
    $region51: #{tpu_custom_call.1} parent=1 // pred_check_branch
      %771 = sbr.rel (0) target = $region53
    $region52: #{tpu_custom_call.1} parent=1 // pred_region
      %773 = vsyncadd [#allocation3], 0
      %s774 = sshll.u32 [#allocation2], 4
      %s775 = int_to_ptr.vmem [resolvable:$true] %s774
      %s776 = sshll.u32 %s12, 4
      %s777 = int_to_ptr.hbm [resolvable:$true] %s776
      %782 = dma.vmem_to_hbm [thread:$0]  %s775, 256, %s777, [#allocation3], 128, 128, 8
    $region53: #{tpu_custom_call.1} parent=1 // pred_fallthru
      _
    // Predicated region
    $region54: #{tpu_custom_call.1} parent=1 // pred_check
      _
    $region55: #{tpu_custom_call.1} parent=1 // pred_check_branch
      %784 = sbr.rel (0) target = $region57
    $region56: #{tpu_custom_call.1} parent=1 // pred_region
      %786 = vsyncadd [#allocation5], 0
      %s788 = sshll.u32 [#allocation4], 4
      %s789 = int_to_ptr.vmem [resolvable:$true] %s788
      %s790 = sshll.u32 %s13, 4
      %s791 = int_to_ptr.hbm [resolvable:$true] %s790
      %793 = dma.vmem_to_hbm [thread:$0]  %s789, 128, %s791, [#allocation5]
    $region57: #{tpu_custom_call.1} parent=1 // pred_fallthru
      _
    // Predicated region
    $region58: #{tpu_custom_call.1} parent=1 // pred_check
      _
    $region59: #{tpu_custom_call.1} parent=1 // pred_check_branch
      %795 = sbr.rel (0) target = $region61
    $region60: #{tpu_custom_call.1} parent=1 // pred_region
      %797 = dma.done [#allocation3], 256
    $region61: #{tpu_custom_call.1} parent=1 // pred_fallthru
      _
    // Predicated region
    $region62: #{tpu_custom_call.1} parent=1 // pred_check
      _
    $region63: #{tpu_custom_call.1} parent=1 // pred_check_branch
      %799 = sbr.rel (0) target = $region65
    $region64: #{tpu_custom_call.1} parent=1 // pred_region
      %801 = dma.done [#allocation5], 128
    $region65: #{tpu_custom_call.1} parent=1 // pred_fallthru
      _
    %802 = vsyncpa [#allocation3], 1
    %803 = vsyncpa [#allocation5], 1

</llo_original>
